<compile_context>
chip_gen: v7x
topology: tpu7x:2x2x1
jax: 0.10.0
libtpu: 0.0.40
codegen_flags: <defaults>
</compile_context>

<pallas_src>
import jax
import jax.numpy as jnp
from jax.experimental import pallas as pl
from jax.experimental.pallas import tpu as pltpu


def _flip_link_kernel(u_ref, v_ref, w1u_ref, w1v_ref, b1_ref, w2_ref, b2_ref, o_ref):
    # In-kernel f32 -> bf16 casts (cheap VPU packs; avoids a separate HBM pass).
    u_bf = u_ref[...].astype(jnp.bfloat16)            # (tm, E)
    v_bf = v_ref[...].astype(jnp.bfloat16)            # (tm, E)

    # Layer 1, transposed: hT[o, n] = sum_i W1u[o, i]*u[n, i] + W1v[o, i]*v[n, i] + b1[o]
    # 'oi,ni->on' is an A @ B.T contraction — same MXU path as q @ k.T.
    hT = (
        jnp.einsum("oi,ni->on", w1u_ref[...], u_bf,
                   preferred_element_type=jnp.float32)
        + jnp.einsum("oi,ni->on", w1v_ref[...], v_bf,
                     preferred_element_type=jnp.float32)
        + b1_ref[...]                                  # (E, 1) broadcast over lanes
    )
    # LeakyReLU(0.2) as mul + max (2 VALU ops per vreg).
    hT = jnp.maximum(hT, 0.2 * hT)

    # Layer 2 on the MXU: (1, E) @ (E, tm) -> lane-dense (1, tm) row.
    y = jnp.dot(w2_ref[...], hT.astype(jnp.bfloat16),
                preferred_element_type=jnp.float32) + b2_ref[0]
    o_ref[...] = y.astype(o_ref.dtype)


def _pick_tm(n, e):
    """Row-tile size.

    Goals (from the perf review):
      * (1, tm) lane-dense output blocks -> tm % 128 == 0 (or tm == n),
      * ~2 MiB of u+v f32 reads per grid step (amortize per-step overhead),
      * double-buffered u+v tiles <= ~8 MiB of VMEM (safe on every generation),
      * >= 2 grid steps whenever possible (feeds both v7x TensorCores).
    """
    if n <= 128:
        return n                                   # single block == full array dims
    row_bytes = 2 * e * 4                          # one row of u + v, f32
    t_traffic = (2 * 1024 * 1024) // row_bytes     # ~2 MiB of input per step
    t_vmem = (8 * 1024 * 1024) // (2 * row_bytes)  # <= ~8 MiB double-buffered u+v
    t_steps = (n + 1) // 2                         # keep >= 2 grid steps
    tm = min(t_traffic, t_vmem, t_steps, 8192)
    return max(128, (tm // 128) * 128)


def flip_link_prediction(u, v, w1, b1, w2, b2, *, tm=None):
    """Forward pass of FLIP_Link_prediction.

    u, v: (N, E) float32.  Torch-layout params: w1 (E, 2E), b1 (E,), w2 (1, E), b2 (1,).
    Returns (N, 1) in u.dtype.
    """
    N, E = u.shape
    assert v.shape == (N, E)
    assert w1.shape == (E, 2 * E) and b1.shape == (E,)
    assert w2.shape == (1, E) and b2.shape == (1,)

    if tm is None:
        tm = _pick_tm(N, E)
    assert tm == N or tm % 128 == 0, "tm must equal N or be a multiple of 128"

    grid = (pl.cdiv(N, tm),)

    # Tiny constant blocks; in a real model these would be stored this way once.
    w1u = w1[:, :E].astype(jnp.bfloat16)            # (E, E), multiplies u
    w1v = w1[:, E:].astype(jnp.bfloat16)            # (E, E), multiplies v
    b1_col = b1.reshape(E, 1).astype(jnp.float32)   # (E, 1) column
    w2_row = w2.astype(jnp.bfloat16)                # (1, E)
    b2_s = b2.astype(jnp.float32)                   # (1,) -> SMEM scalar

    y_row = pl.pallas_call(
        _flip_link_kernel,
        out_shape=jax.ShapeDtypeStruct((1, N), u.dtype),
        grid_spec=pltpu.PrefetchScalarGridSpec(
            num_scalar_prefetch=0,
            grid=grid,
            in_specs=[
                pl.BlockSpec((tm, E), lambda i: (i, 0)),            # u tile (f32)
                pl.BlockSpec((tm, E), lambda i: (i, 0)),            # v tile (f32)
                pl.BlockSpec((E, E), lambda i: (0, 0)),             # W1[:, :E] (bf16)
                pl.BlockSpec((E, E), lambda i: (0, 0)),             # W1[:, E:] (bf16)
                pl.BlockSpec((E, 1), lambda i: (0, 0)),             # b1 column (f32)
                pl.BlockSpec((1, E), lambda i: (0, 0)),             # W2 row    (bf16)
                pl.BlockSpec(memory_space=pltpu.MemorySpace.SMEM),  # b2 scalar
            ],
            out_specs=pl.BlockSpec((1, tm), lambda i: (0, i)),      # lane-dense row
        ),
        compiler_params=pltpu.CompilerParams(
            # Independent row tiles -> shard the grid across both v7x TCs.
            dimension_semantics=("parallel",),
            # Above v5e's 16 MiB scoped default; within v6e/v7x limits.
            vmem_limit_bytes=32 * 1024 * 1024,
        ),
    )(u, v, w1u, w1v, b1_col, w2_row, b2_s)

    # (1, N) and (N, 1) share the same linearization -> free reshape.
    return y_row.reshape(N, 1)


def _xavier_uniform(key, shape):
    # nn.init.xavier_uniform_ on a torch Linear weight of shape (out, in).
    fan_out, fan_in = shape
    bound = (6.0 / (fan_in + fan_out)) ** 0.5
    return jax.random.uniform(key, shape, jnp.float32, minval=-bound, maxval=bound)


def _reference_f32(u, v, w1, b1, w2, b2):
    link = jnp.concatenate([u, v], axis=1)
    h = link @ w1.T + b1
    h = jnp.where(h > 0, h, 0.2 * h)
    return h @ w2.T + b2


def _reference_kernel_rounding(u, v, w1, b1, w2, b2):
    # Mirrors the kernel's bf16 roundings (inputs, weights, h) with f32 accumulation.
    r = lambda x: x.astype(jnp.bfloat16).astype(jnp.float32)
    link = jnp.concatenate([r(u), r(v)], axis=1)
    h = link @ r(w1).T + b1
    h = jnp.maximum(h, 0.2 * h)
    return r(h) @ r(w2).T + b2


if __name__ == "__main__":
    emb_dim = 32
    batch = 256          # -> tm = 128, 2 grid steps: exercises the tiled/parallel path

    key = jax.random.PRNGKey(0)
    k_u, k_v, k_w1, k_w2 = jax.random.split(key, 4)

    u = jax.random.normal(k_u, (batch, emb_dim), jnp.float32)
    v = jax.random.normal(k_v, (batch, emb_dim), jnp.float32)

    # Deterministic "xavier_init": xavier_uniform weights, zero biases (torch layout).
    w1 = _xavier_uniform(k_w1, (emb_dim, 2 * emb_dim))
    b1 = jnp.zeros((emb_dim,), jnp.float32)
    w2 = _xavier_uniform(k_w2, (1, emb_dim))
    b2 = jnp.zeros((1,), jnp.float32)

    y = flip_link_prediction(u, v, w1, b1, w2, b2)
    y = jax.block_until_ready(y)
    assert y.shape == (batch, 1)

    # Tight check vs a reference that applies the same bf16 roundings
    # (residual = f32 accumulation-order noise only).
    y_mirror = _reference_kernel_rounding(u, v, w1, b1, w2, b2)
    assert jnp.allclose(y, y_mirror, atol=2e-3, rtol=2e-3), "mismatch vs bf16-rounded reference"

    # Loose check vs the pure-f32 PyTorch semantics (bf16 rounding of inputs,
    # weights and h is the only difference).
    y_f32 = _reference_f32(u, v, w1, b1, w2, b2)
    assert jnp.allclose(y, y_f32, atol=1e-1, rtol=1e-1), "mismatch vs f32 reference"

    print("KERNEL_OK")
</pallas_src>

<mosaic_0001>
module attributes {stable_mosaic.version = 11 : i64} {
  func.func @_flip_link_kernel(%arg0: i32, %arg1: memref<128x32xf32, #tpu.memory_space<vmem>>, %arg2: memref<128x32xf32, #tpu.memory_space<vmem>>, %arg3: memref<32x32xbf16, #tpu.memory_space<vmem>>, %arg4: memref<32x32xbf16, #tpu.memory_space<vmem>>, %arg5: memref<32x1xf32, #tpu.memory_space<vmem>>, %arg6: memref<1x32xbf16, #tpu.memory_space<vmem>>, %arg7: memref<1xf32, #tpu.memory_space<smem>>, %arg8: memref<1x128xf32, #tpu.memory_space<vmem>>) attributes {dimension_semantics = [#tpu.dimension_semantics<parallel>], iteration_bounds = array<i64: 2>, scalar_prefetch = 0 : i64, scratch_operands = 0 : i64, tpu.core_type = #tpu.core_type<tc>, window_params = [{transform_indices = @transform_0, window_bounds = array<i64: 128, 32>}, {transform_indices = @transform_1, window_bounds = array<i64: 128, 32>}, {pipeline_mode = #tpu.pipeline_mode<synchronous>, transform_indices = @transform_2, window_bounds = array<i64: 32, 32>}, {pipeline_mode = #tpu.pipeline_mode<synchronous>, transform_indices = @transform_3, window_bounds = array<i64: 32, 32>}, {pipeline_mode = #tpu.pipeline_mode<synchronous>, transform_indices = @transform_4, window_bounds = array<i64: 32, 1>}, {pipeline_mode = #tpu.pipeline_mode<synchronous>, transform_indices = @transform_5, window_bounds = array<i64: 1, 32>}, {transform_indices = @transform_6, window_bounds = array<i64: 1>}, {transform_indices = @transform_7, window_bounds = array<i64: 1, 128>}]} {
    %c0 = arith.constant 0 : index
    %c0_0 = arith.constant 0 : index
    %0 = vector.load %arg1[%c0, %c0_0] : memref<128x32xf32, #tpu.memory_space<vmem>>, vector<128x32xf32>
    %1 = arith.truncf %0 : vector<128x32xf32> to vector<128x32xbf16>
    %c0_1 = arith.constant 0 : index
    %c0_2 = arith.constant 0 : index
    %2 = vector.load %arg2[%c0_1, %c0_2] : memref<128x32xf32, #tpu.memory_space<vmem>>, vector<128x32xf32>
    %3 = arith.truncf %2 : vector<128x32xf32> to vector<128x32xbf16>
    %c0_3 = arith.constant 0 : index
    %c0_4 = arith.constant 0 : index
    %4 = vector.load %arg3[%c0_3, %c0_4] : memref<32x32xbf16, #tpu.memory_space<vmem>>, vector<32x32xbf16>
    "tpu.trace_start"() <{level = 10 : i32, message = "oi,ni->on"}> : () -> ()
    %cst = arith.constant dense<0.000000e+00> : vector<32x128xf32>
    %5 = tpu.matmul %4, %1, %cst {dimension_numbers = #tpu.dot_dimension_numbers<[1], [1], [0], [0], [0, 0, 1, 0], [], []>} : vector<32x32xbf16>, vector<128x32xbf16>, vector<32x128xf32> -> vector<32x128xf32>
    "tpu.trace_stop"() : () -> ()
    %c0_5 = arith.constant 0 : index
    %c0_6 = arith.constant 0 : index
    %6 = vector.load %arg4[%c0_5, %c0_6] : memref<32x32xbf16, #tpu.memory_space<vmem>>, vector<32x32xbf16>
    "tpu.trace_start"() <{level = 10 : i32, message = "oi,ni->on"}> : () -> ()
    %cst_7 = arith.constant dense<0.000000e+00> : vector<32x128xf32>
    %7 = tpu.matmul %6, %3, %cst_7 {dimension_numbers = #tpu.dot_dimension_numbers<[1], [1], [0], [0], [0, 0, 1, 0], [], []>} : vector<32x32xbf16>, vector<128x32xbf16>, vector<32x128xf32> -> vector<32x128xf32>
    "tpu.trace_stop"() : () -> ()
    %8 = arith.addf %5, %7 : vector<32x128xf32>
    %c0_8 = arith.constant 0 : index
    %c0_9 = arith.constant 0 : index
    %9 = vector.load %arg5[%c0_8, %c0_9] : memref<32x1xf32, #tpu.memory_space<vmem>>, vector<32x1xf32>
    %10 = vector.broadcast %9 : vector<32x1xf32> to vector<32x128xf32>
    %11 = arith.addf %8, %10 : vector<32x128xf32>
    %cst_10 = arith.constant 2.000000e-01 : f32
    %12 = vector.broadcast %cst_10 : f32 to vector<32x128xf32>
    %13 = arith.mulf %12, %11 : vector<32x128xf32>
    %14 = arith.maximumf %11, %13 : vector<32x128xf32>
    %c0_11 = arith.constant 0 : index
    %c0_12 = arith.constant 0 : index
    %15 = vector.load %arg6[%c0_11, %c0_12] : memref<1x32xbf16, #tpu.memory_space<vmem>>, vector<1x32xbf16>
    %16 = arith.truncf %14 : vector<32x128xf32> to vector<32x128xbf16>
    %cst_13 = arith.constant dense<0.000000e+00> : vector<1x128xf32>
    %17 = tpu.matmul %15, %16, %cst_13 {dimension_numbers = #tpu.dot_dimension_numbers<[1], [0], [0], [1], [0, 0, 1, 1], [], []>} : vector<1x32xbf16>, vector<32x128xbf16>, vector<1x128xf32> -> vector<1x128xf32>
    %c0_14 = arith.constant 0 : index
    %18 = memref.load %arg7[%c0_14] : memref<1xf32, #tpu.memory_space<smem>>
    %19 = vector.broadcast %18 : f32 to vector<1x128xf32>
    %20 = arith.addf %17, %19 : vector<1x128xf32>
    %c0_15 = arith.constant 0 : index
    %c0_16 = arith.constant 0 : index
    %21 = vector.load %arg8[%c0_15, %c0_16] : memref<1x128xf32, #tpu.memory_space<vmem>>, vector<1x128xf32>
    tpu.vector_store %arg8[%c0_15, %c0_16], %20 {strides = array<i32>} : memref<1x128xf32, #tpu.memory_space<vmem>>, vector<1x128xf32>,
    return
  }
  func.func @transform_0(%arg0: i32) -> (i32, i32) {
    %c0_i32 = arith.constant 0 : i32
    %c0_i32_0 = arith.constant 0 : i32
    return %arg0, %c0_i32 : i32, i32
  }
  func.func @transform_1(%arg0: i32) -> (i32, i32) {
    %c0_i32 = arith.constant 0 : i32
    %c0_i32_0 = arith.constant 0 : i32
    return %arg0, %c0_i32 : i32, i32
  }
  func.func @transform_2(%arg0: i32) -> (i32, i32) {
    %c0_i32 = arith.constant 0 : i32
    %c0_i32_0 = arith.constant 0 : i32
    %c0_i32_1 = arith.constant 0 : i32
    return %c0_i32, %c0_i32_0 : i32, i32
  }
  func.func @transform_3(%arg0: i32) -> (i32, i32) {
    %c0_i32 = arith.constant 0 : i32
    %c0_i32_0 = arith.constant 0 : i32
    %c0_i32_1 = arith.constant 0 : i32
    return %c0_i32, %c0_i32_0 : i32, i32
  }
  func.func @transform_4(%arg0: i32) -> (i32, i32) {
    %c0_i32 = arith.constant 0 : i32
    %c0_i32_0 = arith.constant 0 : i32
    %c0_i32_1 = arith.constant 0 : i32
    return %c0_i32, %c0_i32_0 : i32, i32
  }
  func.func @transform_5(%arg0: i32) -> (i32, i32) {
    %c0_i32 = arith.constant 0 : i32
    %c0_i32_0 = arith.constant 0 : i32
    %c0_i32_1 = arith.constant 0 : i32
    return %c0_i32, %c0_i32_0 : i32, i32
  }
  func.func @transform_6(%arg0: i32) -> i32 {
    %c0_i32 = arith.constant 0 : i32
    %c0_i32_0 = arith.constant 0 : i32
    return %c0_i32 : i32
  }
  func.func @transform_7(%arg0: i32) -> (i32, i32) {
    %c0_i32 = arith.constant 0 : i32
    %c0_i32_0 = arith.constant 0 : i32
    return %c0_i32, %arg0 : i32, i32
  }
}

</mosaic_0001>

<llo_original>
// kernel: tpu_custom_call.1
$region0: #{tpu_custom_call.1}
  #allocation0 [shape = 'u32[]', space=smem, size = 0x4, offset = 0x4, fixed_abs, tag = 'smem constant byte address 0x4 - core index']
  #allocation1 [shape = 'u32[144,128]{1,0:T(1,128)}', space=vmem, size = 0x12000, scoped, tag = 'internal scratch']
  #allocation2 [shape = 'f32[1]{0:T(128)S(6)}', space=smem, size = 0x200, scoped, tag = 'scoped memory for tpu_custom_call.1']
  %s0 = inlined_call_operand.vmem [shape: f32[256,32], index: 0, kind: input, shape index: {}]
  %s1 = inlined_call_operand.vmem [shape: f32[256,32], index: 1, kind: input, shape index: {}]
  %s2 = inlined_call_operand.vmem [shape: bf16[32,32], index: 2, kind: input, shape index: {}]
  %s3 = inlined_call_operand.vmem [shape: bf16[32,32], index: 3, kind: input, shape index: {}]
  %s4 = inlined_call_operand.vmem [shape: f32[32,1], index: 4, kind: input, shape index: {}]
  %s5 = inlined_call_operand.vmem [shape: bf16[1,32], index: 5, kind: input, shape index: {}]
  %s6 = inlined_call_operand.<no memory space> [shape: f32[1], index: 6, kind: input, shape index: {}]
  %s7 = inlined_call_operand.hbm [shape: f32[1,256], index: 7, kind: output, shape index: {}]
  %s8 = sld [smem:[#allocation0]]
  $region61: #{tpu_custom_call.1} parent=0
    _
  %s10 = ssub.s32 1, %s8
  %s11 = scalar_select 0, %s10, %s8
  %12 = sst [smem:[#allocation2]] %s6
  $region1: #{tpu_custom_call.1} parent=0
    #allocation3 [shape = 'u8[1024]{0}', space=vmem, size = 0x400, scoped, tag = 'output window, operand 0']
    #allocation4 [shape = 's32[2]{0}', space=sflag, size = 0x8, scoped, tag = 'scoped memory for tpu_custom_call.1']
    %13 = vsyncpa [#allocation4], 0
    %s14 = scalar_lea.sflag [#allocation4], 1
    %15 = vsyncpa %s14, 0
    loop: start=0, step=1, limit=4
    $region2: #{tpu_custom_call.1} parent=1 // loop_pre_header
      _
    $region3: #{tpu_custom_call.1} parent=1 // loop_header
      %s17 = sphi 0, %s21
      %p18 = scmp.ge.s32.totalorder %s17, 4
      %s27 = sphi 0, %s29
      %s30 = sphi 0, %s27
      %s31 = sphi 0, %s30
      %s47 = sphi 0, %s31
      %s53 = sphi 0, %s55
      %s56 = sphi 0, %s53
      %s57 = sphi 0, %s56
      %s73 = sphi 0, %s57
      %s77 = sphi 0, %s77
      %s79 = sphi 0, %s77
      %s80 = sphi 0, %s79
      %s94 = sphi 0, %s80
      %s98 = sphi 0, %s98
      %s100 = sphi 0, %s98
      %s101 = sphi 0, %s100
      %s115 = sphi 0, %s101
      %s119 = sphi 0, %s119
      %s121 = sphi 0, %s119
      %s122 = sphi 0, %s121
      %s136 = sphi 0, %s122
      %s140 = sphi 0, %s140
      %s142 = sphi 0, %s140
      %s143 = sphi 0, %s142
      %s157 = sphi 0, %s143
      %s161 = sphi 0, %s161
      %s163 = sphi 0, %s161
      %s164 = sphi 0, %s163
      %s178 = sphi 0, %s164
      %s184 = sphi 0, %s186
      %s187 = sphi 0, %s184
      %s188 = sphi 0, %s187
      %s204 = sphi 0, %s188
    $region4: #{tpu_custom_call.1} parent=1 // loop_header_branch
      %20 = sbr.rel (%p18) target = $region8
    $region5: #{tpu_custom_call.1} parent=1 // loop_body
      %s22 = ssub.s32 %s17, 1
      %s23 = ssub.s32 %s17, 2
      %s24 = sadd.s32 %s17, 1
      %s25 = ssub.s32 %s17, %s24
      %p26 = scmp.eq.s32.totalorder %s25, 0
      %s28 = sadd.s32 %s27, 1
      %s29 = scalar_select %p26, %s27, %s28
      %p32 = pneg %p26
      %p33 = scmp.eq.s32.totalorder %s17, 1
      %p34 = por %p32, %p33
      %p35 = scmp.ne.s32.totalorder %s27, %s30
      %p36 = scmp.eq.s32.totalorder %s17, 0
      %p37 = por %p35, %p36
      %p38 = scmp.ne.s32.totalorder %s27, %s30
      %p39 = scmp.eq.s32.totalorder %s22, 1
      %p40 = por %p38, %p39
      %p41 = scmp.ne.s32.totalorder %s30, %s31
      %p42 = scmp.eq.s32.totalorder %s22, 0
      %p43 = por %p41, %p42
      %p44 = scmp.ne.s32.totalorder %s30, %s31
      %p45 = scmp.eq.s32.totalorder %s23, 1
      %p46 = por %p44, %p45
      %p48 = scmp.ne.s32.totalorder %s31, %s47
      %p49 = scmp.eq.s32.totalorder %s23, 0
      %p50 = por %p48, %p49
      %s51 = ssub.s32 %s17, %s24
      %p52 = scmp.eq.s32.totalorder %s51, 0
      %s54 = sadd.s32 %s53, 1
      %s55 = scalar_select %p52, %s53, %s54
      %p58 = pneg %p52
      %p59 = scmp.eq.s32.totalorder %s17, 1
      %p60 = por %p58, %p59
      %p61 = scmp.ne.s32.totalorder %s53, %s56
      %p62 = scmp.eq.s32.totalorder %s17, 0
      %p63 = por %p61, %p62
      %p64 = scmp.ne.s32.totalorder %s53, %s56
      %p65 = scmp.eq.s32.totalorder %s22, 1
      %p66 = por %p64, %p65
      %p67 = scmp.ne.s32.totalorder %s56, %s57
      %p68 = scmp.eq.s32.totalorder %s22, 0
      %p69 = por %p67, %p68
      %p70 = scmp.ne.s32.totalorder %s56, %s57
      %p71 = scmp.eq.s32.totalorder %s23, 1
      %p72 = por %p70, %p71
      %p74 = scmp.ne.s32.totalorder %s57, %s73
      %p75 = scmp.eq.s32.totalorder %s23, 0
      %p76 = por %p74, %p75
      %s78 = sadd.s32 %s77, 1
      %p81 = scmp.eq.s32.totalorder %s17, 1
      %p82 = scmp.ne.s32.totalorder %s77, %s79
      %p83 = scmp.eq.s32.totalorder %s17, 0
      %p84 = por %p82, %p83
      %p85 = scmp.ne.s32.totalorder %s77, %s79
      %p86 = scmp.eq.s32.totalorder %s22, 1
      %p87 = por %p85, %p86
      %p88 = scmp.ne.s32.totalorder %s79, %s80
      %p89 = scmp.eq.s32.totalorder %s22, 0
      %p90 = por %p88, %p89
      %p91 = scmp.ne.s32.totalorder %s79, %s80
      %p92 = scmp.eq.s32.totalorder %s23, 1
      %p93 = por %p91, %p92
      %p95 = scmp.ne.s32.totalorder %s80, %s94
      %p96 = scmp.eq.s32.totalorder %s23, 0
      %p97 = por %p95, %p96
      %s99 = sadd.s32 %s98, 1
      %p102 = scmp.eq.s32.totalorder %s17, 1
      %p103 = scmp.ne.s32.totalorder %s98, %s100
      %p104 = scmp.eq.s32.totalorder %s17, 0
      %p105 = por %p103, %p104
      %p106 = scmp.ne.s32.totalorder %s98, %s100
      %p107 = scmp.eq.s32.totalorder %s22, 1
      %p108 = por %p106, %p107
      %p109 = scmp.ne.s32.totalorder %s100, %s101
      %p110 = scmp.eq.s32.totalorder %s22, 0
      %p111 = por %p109, %p110
      %p112 = scmp.ne.s32.totalorder %s100, %s101
      %p113 = scmp.eq.s32.totalorder %s23, 1
      %p114 = por %p112, %p113
      %p116 = scmp.ne.s32.totalorder %s101, %s115
      %p117 = scmp.eq.s32.totalorder %s23, 0
      %p118 = por %p116, %p117
      %s120 = sadd.s32 %s119, 1
      %p123 = scmp.eq.s32.totalorder %s17, 1
      %p124 = scmp.ne.s32.totalorder %s119, %s121
      %p125 = scmp.eq.s32.totalorder %s17, 0
      %p126 = por %p124, %p125
      %p127 = scmp.ne.s32.totalorder %s119, %s121
      %p128 = scmp.eq.s32.totalorder %s22, 1
      %p129 = por %p127, %p128
      %p130 = scmp.ne.s32.totalorder %s121, %s122
      %p131 = scmp.eq.s32.totalorder %s22, 0
      %p132 = por %p130, %p131
      %p133 = scmp.ne.s32.totalorder %s121, %s122
      %p134 = scmp.eq.s32.totalorder %s23, 1
      %p135 = por %p133, %p134
      %p137 = scmp.ne.s32.totalorder %s122, %s136
      %p138 = scmp.eq.s32.totalorder %s23, 0
      %p139 = por %p137, %p138
      %s141 = sadd.s32 %s140, 1
      %p144 = scmp.eq.s32.totalorder %s17, 1
      %p145 = scmp.ne.s32.totalorder %s140, %s142
      %p146 = scmp.eq.s32.totalorder %s17, 0
      %p147 = por %p145, %p146
      %p148 = scmp.ne.s32.totalorder %s140, %s142
      %p149 = scmp.eq.s32.totalorder %s22, 1
      %p150 = por %p148, %p149
      %p151 = scmp.ne.s32.totalorder %s142, %s143
      %p152 = scmp.eq.s32.totalorder %s22, 0
      %p153 = por %p151, %p152
      %p154 = scmp.ne.s32.totalorder %s142, %s143
      %p155 = scmp.eq.s32.totalorder %s23, 1
      %p156 = por %p154, %p155
      %p158 = scmp.ne.s32.totalorder %s143, %s157
      %p159 = scmp.eq.s32.totalorder %s23, 0
      %p160 = por %p158, %p159
      %s162 = sadd.s32 %s161, 1
      %p165 = scmp.eq.s32.totalorder %s17, 1
      %p166 = scmp.ne.s32.totalorder %s161, %s163
      %p167 = scmp.eq.s32.totalorder %s17, 0
      %p168 = por %p166, %p167
      %p169 = scmp.ne.s32.totalorder %s161, %s163
      %p170 = scmp.eq.s32.totalorder %s22, 1
      %p171 = por %p169, %p170
      %p172 = scmp.ne.s32.totalorder %s163, %s164
      %p173 = scmp.eq.s32.totalorder %s22, 0
      %p174 = por %p172, %p173
      %p175 = scmp.ne.s32.totalorder %s163, %s164
      %p176 = scmp.eq.s32.totalorder %s23, 1
      %p177 = por %p175, %p176
      %p179 = scmp.ne.s32.totalorder %s164, %s178
      %p180 = scmp.eq.s32.totalorder %s23, 0
      %p181 = por %p179, %p180
      %s182 = ssub.s32 %s17, %s24
      %p183 = scmp.eq.s32.totalorder %s182, 0
      %s185 = sadd.s32 %s184, 1
      %s186 = scalar_select %p183, %s184, %s185
      %p189 = pneg %p183
      %p190 = scmp.eq.s32.totalorder %s17, 1
      %p191 = por %p189, %p190
      %p192 = scmp.ne.s32.totalorder %s184, %s187
      %p193 = scmp.eq.s32.totalorder %s17, 0
      %p194 = por %p192, %p193
      %p195 = scmp.ne.s32.totalorder %s184, %s187
      %p196 = scmp.eq.s32.totalorder %s22, 1
      %p197 = por %p195, %p196
      %p198 = scmp.ne.s32.totalorder %s187, %s188
      %p199 = scmp.eq.s32.totalorder %s22, 0
      %p200 = por %p198, %p199
      %p201 = scmp.ne.s32.totalorder %s187, %s188
      %p202 = scmp.eq.s32.totalorder %s23, 1
      %p203 = por %p201, %p202
      %p205 = scmp.ne.s32.totalorder %s188, %s204
      %p206 = scmp.eq.s32.totalorder %s23, 0
      %p207 = por %p205, %p206
      %p208 = scmp.le.s32.totalorder 1, %s17
      %p209 = scmp.lt.s32.totalorder %s17, 3
      %p210 = pnand %p208, %p209
      %p211 = pneg %p210
      // Predicated region
      $region9: #{tpu_custom_call.1} parent=5 // pred_check
        _
      $region10: #{tpu_custom_call.1} parent=5 // pred_check_branch
        %213 = sbr.rel (%p210) target = $region12
      $region11: #{tpu_custom_call.1} parent=5 // pred_region
        %s214 = ssub.s32 %s17, 1
        // Predicated region
        $region13: #{tpu_custom_call.1} parent=11 // pred_check
          %p215 = pneg %p90
        $region14: #{tpu_custom_call.1} parent=11 // pred_check_branch
          %217 = sbr.rel (%p215) target = $region16
        $region15: #{tpu_custom_call.1} parent=11 // pred_region
          _
        $region16: #{tpu_custom_call.1} parent=11 // pred_fallthru
          _
        // Predicated region
        $region17: #{tpu_custom_call.1} parent=11 // pred_check
          %p218 = pneg %p111
        $region18: #{tpu_custom_call.1} parent=11 // pred_check_branch
          %220 = sbr.rel (%p218) target = $region20
        $region19: #{tpu_custom_call.1} parent=11 // pred_region
          _
        $region20: #{tpu_custom_call.1} parent=11 // pred_fallthru
          _
        // Predicated region
        $region21: #{tpu_custom_call.1} parent=11 // pred_check
          %p221 = pneg %p132
        $region22: #{tpu_custom_call.1} parent=11 // pred_check_branch
          %223 = sbr.rel (%p221) target = $region24
        $region23: #{tpu_custom_call.1} parent=11 // pred_region
          _
        $region24: #{tpu_custom_call.1} parent=11 // pred_fallthru
          _
        // Predicated region
        $region25: #{tpu_custom_call.1} parent=11 // pred_check
          %p224 = pneg %p153
        $region26: #{tpu_custom_call.1} parent=11 // pred_check_branch
          %226 = sbr.rel (%p224) target = $region28
        $region27: #{tpu_custom_call.1} parent=11 // pred_region
          _
        $region28: #{tpu_custom_call.1} parent=11 // pred_fallthru
          _
        // Predicated region
        $region29: #{tpu_custom_call.1} parent=11 // pred_check
          %p227 = pneg %p174
        $region30: #{tpu_custom_call.1} parent=11 // pred_check_branch
          %229 = sbr.rel (%p227) target = $region32
        $region31: #{tpu_custom_call.1} parent=11 // pred_region
          _
        $region32: #{tpu_custom_call.1} parent=11 // pred_fallthru
          _
      $region12: #{tpu_custom_call.1} parent=5 // pred_fallthru
        _
      %p230 = scmp.lt.s32.totalorder %s17, 2
      // Predicated region
      $region33: #{tpu_custom_call.1} parent=5 // pred_check
        %p231 = pneg %p230
      $region34: #{tpu_custom_call.1} parent=5 // pred_check_branch
        %233 = sbr.rel (%p231) target = $region36
      $region35: #{tpu_custom_call.1} parent=5 // pred_region
        // Predicated region
        $region37: #{tpu_custom_call.1} parent=35 // pred_check
          %p234 = pneg %p37
        $region38: #{tpu_custom_call.1} parent=35 // pred_check_branch
          %236 = sbr.rel (%p234) target = $region40
        $region39: #{tpu_custom_call.1} parent=35 // pred_region
          %s237 = smul.u32 16, %s17
          %p238 = scmp.lt.s32.totalorder %s237, 31
          %s239 = scalar_select %p238, %s237, 31
          %s240 = smul.addr %s239, 8
          %s241 = scalar_lea.vmem %s0, %s240
          %s242 = smul.u32 16, %s17
        $region40: #{tpu_custom_call.1} parent=35 // pred_fallthru
          _
        // Predicated region
        $region41: #{tpu_custom_call.1} parent=35 // pred_check
          %p243 = pneg %p63
        $region42: #{tpu_custom_call.1} parent=35 // pred_check_branch
          %245 = sbr.rel (%p243) target = $region44
        $region43: #{tpu_custom_call.1} parent=35 // pred_region
          %s246 = smul.u32 16, %s17
          %p247 = scmp.lt.s32.totalorder %s246, 31
          %s248 = scalar_select %p247, %s246, 31
          %s249 = smul.addr %s248, 8
          %s250 = scalar_lea.vmem %s1, %s249
          %s251 = smul.u32 16, %s17
        $region44: #{tpu_custom_call.1} parent=35 // pred_fallthru
          _
      $region36: #{tpu_custom_call.1} parent=5 // pred_fallthru
        _
      %p252 = scmp.le.s32.totalorder 1, %s17
      %p253 = scmp.lt.s32.totalorder %s17, 3
      %p254 = pnand %p252, %p253
      %p255 = pneg %p254
      // Predicated region
      $region45: #{tpu_custom_call.1} parent=5 // pred_check
        _
      $region46: #{tpu_custom_call.1} parent=5 // pred_check_branch
        %257 = sbr.rel (%p254) target = $region48
      $region47: #{tpu_custom_call.1} parent=5 // pred_region
        %s258 = ssub.s32 %s17, 1
        %s259 = smul.u32 16, %s22
        %p260 = scmp.lt.s32.totalorder %s259, 31
        %s261 = scalar_select %p260, %s259, 31
        %s262 = smul.addr %s261, 8
        %s263 = scalar_lea.vmem %s0, %s262
        %p264 = pneg %p43
        %p265 = pneg %p40
        %s266 = smul.u32 16, %s22
        %p267 = scmp.lt.s32.totalorder %s266, 31
        %s268 = scalar_select %p267, %s266, 31
        %s269 = smul.addr %s268, 8
        %s270 = scalar_lea.vmem %s1, %s269
        %p271 = pneg %p69
        %p272 = pneg %p66
        %p273 = pneg %p90
        %p274 = pneg %p87
        %p275 = pneg %p111
        %p276 = pneg %p108
        %p277 = pneg %p132
        %p278 = pneg %p129
        %p279 = pneg %p153
        %p280 = pneg %p150
        %p281 = pneg %p174
        %p282 = pneg %p171
        %p283 = pneg %p200
        %p284 = pneg %p197
        %s285 = sand.u32 %s187, 1
        %s286 = scalar_lea.sflag [#allocation4], %s285
        %s287 = sand.u32 %s187, 1
        %s288 = scalar_lea.vmem [#allocation3], %s287
        %s289 = smul.u32 16, %s22
        %p290 = scmp.lt.s32.totalorder %s289, 31
        %s291 = scalar_select %p290, %s289, 31
        %s292 = smul.addr %s291, 8
        %s293 = scalar_lea.vmem %s0, %s292
        %s294 = smul.u32 16, %s22
        %s295 = smul.u32 16, %s22
        %p296 = scmp.lt.s32.totalorder %s295, 31
        %s297 = scalar_select %p296, %s295, 31
        %s298 = smul.addr %s297, 8
        %s299 = scalar_lea.vmem %s1, %s298
        %s300 = smul.u32 16, %s22
        %v302 = vld [vmem:[%s293] sm:$0xff]
        %v303 = vld [vmem:[%s293 + $0x8] sm:$0xff]
        %v304 = vld [vmem:[%s293 + $0x10] sm:$0xff]
        %v305 = vld [vmem:[%s293 + $0x18] sm:$0xff]
        %v306 = vld [vmem:[%s293 + $0x20] sm:$0xff]
        %v307 = vld [vmem:[%s293 + $0x28] sm:$0xff]
        %v308 = vld [vmem:[%s293 + $0x30] sm:$0xff]
        %v309 = vld [vmem:[%s293 + $0x38] sm:$0xff]
        %v310 = vld [vmem:[%s293 + $0x40] sm:$0xff]
        %v311 = vld [vmem:[%s293 + $0x48] sm:$0xff]
        %v312 = vld [vmem:[%s293 + $0x50] sm:$0xff]
        %v313 = vld [vmem:[%s293 + $0x58] sm:$0xff]
        %v314 = vld [vmem:[%s293 + $0x60] sm:$0xff]
        %v315 = vld [vmem:[%s293 + $0x68] sm:$0xff]
        %v316 = vld [vmem:[%s293 + $0x70] sm:$0xff]
        %v317 = vld [vmem:[%s293 + $0x78] sm:$0xff]
        %v318 = vpack.c.bf16 %v303, %v302
        %v319 = vpack.c.bf16 %v305, %v304
        %v320 = vpack.c.bf16 %v307, %v306
        %v321 = vpack.c.bf16 %v309, %v308
        %v322 = vpack.c.bf16 %v311, %v310
        %v323 = vpack.c.bf16 %v313, %v312
        %v324 = vpack.c.bf16 %v315, %v314
        %v325 = vpack.c.bf16 %v317, %v316
        %v326 = vld [vmem:[%s299] sm:$0xff]
        %v327 = vld [vmem:[%s299 + $0x8] sm:$0xff]
        %v328 = vld [vmem:[%s299 + $0x10] sm:$0xff]
        %v329 = vld [vmem:[%s299 + $0x18] sm:$0xff]
        %v330 = vld [vmem:[%s299 + $0x20] sm:$0xff]
        %v331 = vld [vmem:[%s299 + $0x28] sm:$0xff]
        %v332 = vld [vmem:[%s299 + $0x30] sm:$0xff]
        %v333 = vld [vmem:[%s299 + $0x38] sm:$0xff]
        %v334 = vld [vmem:[%s299 + $0x40] sm:$0xff]
        %v335 = vld [vmem:[%s299 + $0x48] sm:$0xff]
        %v336 = vld [vmem:[%s299 + $0x50] sm:$0xff]
        %v337 = vld [vmem:[%s299 + $0x58] sm:$0xff]
        %v338 = vld [vmem:[%s299 + $0x60] sm:$0xff]
        %v339 = vld [vmem:[%s299 + $0x68] sm:$0xff]
        %v340 = vld [vmem:[%s299 + $0x70] sm:$0xff]
        %v341 = vld [vmem:[%s299 + $0x78] sm:$0xff]
        %v342 = vpack.c.bf16 %v327, %v326
        %v343 = vpack.c.bf16 %v329, %v328
        %v344 = vpack.c.bf16 %v331, %v330
        %v345 = vpack.c.bf16 %v333, %v332
        %v346 = vpack.c.bf16 %v335, %v334
        %v347 = vpack.c.bf16 %v337, %v336
        %v348 = vpack.c.bf16 %v339, %v338
        %v349 = vpack.c.bf16 %v341, %v340
        %v350 = vld [vmem:[%s2] sm:$0xf]
        %v351 = vld [vmem:[%s2 + $0x4] sm:$0xf]
        %v352 = vld [vmem:[%s2 + $0x8] sm:$0xf]
        %v353 = vld [vmem:[%s2 + $0xc] sm:$0xf]
        %v354 = vld [vmem:[%s3] sm:$0xf]
        %v355 = vld [vmem:[%s3 + $0x4] sm:$0xf]
        %v356 = vld [vmem:[%s3 + $0x8] sm:$0xf]
        %v357 = vld [vmem:[%s3 + $0xc] sm:$0xf]
        %v362 = vunpack.c.l.b16 %v354
        %v363 = vunpack.c.l.b16 %v355
        %v364 = vunpack.c.l.b16 %v356
        %v365 = vunpack.c.l.b16 %v357
        %v366 = vpack.c.b16 %v363, %v362
        %v367 = vpack.c.b16 %v365, %v364
        %vm368 = vcmask 261120
        %v370 = vsel %vm368, %v366, 0
        %v373 = vsel %vm368, %v367, 0
        %v376 = vsel %vm368, %v342, 0
        %v379 = vsel %vm368, %v343, 0
        %v382 = vsel %vm368, %v344, 0
        %v385 = vsel %vm368, %v345, 0
        %v388 = vsel %vm368, %v346, 0
        %v391 = vsel %vm368, %v347, 0
        %v394 = vsel %vm368, %v348, 0
        %v397 = vsel %vm368, %v349, 0
        %399 = vmatprep.subr.bf16.mxu0 0
        %400 = vmatpush1.bf16.xpose.msra.mxu0 %v376
        %401 = vmatprep.subr.bf16.mxu0 0
        %402 = vmatpush1.bf16.xpose.msra.mxu0 %v379
        %403 = vmatprep.subr.bf16.mxu0 0
        %404 = vmatpush1.bf16.xpose.msra.mxu0 %v382
        %405 = vmatprep.subr.bf16.mxu0 0
        %406 = vmatpush1.bf16.xpose.msra.mxu0 %v385
        %407 = vmatprep.subr.bf16.mxu0 0
        %408 = vmatpush1.bf16.xpose.msra.mxu0 %v388
        %409 = vmatprep.subr.bf16.mxu0 0
        %410 = vmatpush1.bf16.xpose.msra.mxu0 %v391
        %411 = vmatprep.subr.bf16.mxu0 0
        %412 = vmatpush1.bf16.xpose.msra.mxu0 %v394
        %413 = vmatprep.subr.bf16.mxu0 0
        %414 = vmatpush1.bf16.xpose.msra.mxu0 %v397
        %415 = vmatprep.subr.bf16.mxu0 0
        %416 = vmatpush1.bf16.xpose.msra.mxu0 0
        %417 = vmatprep.subr.bf16.mxu0 0
        %418 = vmatpush1.bf16.xpose.msra.mxu0 0
        %419 = vmatprep.subr.bf16.mxu0 0
        %420 = vmatpush1.bf16.xpose.msra.mxu0 0
        %421 = vmatprep.subr.bf16.mxu0 0
        %422 = vmatpush1.bf16.xpose.msra.mxu0 0
        %423 = vmatprep.subr.bf16.mxu0 0
        %424 = vmatpush1.bf16.xpose.msra.mxu0 0
        %425 = vmatprep.subr.bf16.mxu0 0
        %426 = vmatpush1.bf16.xpose.msra.mxu0 0
        %427 = vmatprep.subr.bf16.mxu0 0
        %428 = vmatpush1.bf16.xpose.msra.mxu0 0
        %429 = vmatprep.subr.bf16.mxu0 0
        %430 = vmatpush1.bf16.xpose.msra.mxu0 0
        %431 = vmatprep.mubr.bf16.mxu0 0
        %432 = vmatmul.mubr.bf16.gmra.mrb[0].mxu0 %v370
        %v433 = vpop.f32.mrb[0].mxu0
        %v434 = vadd.f32 0.0, %v433
        %v435 = vpop.f32.mrb[0].mxu0
        %v436 = vpop.f32.mrb[0].mxu0
        %v437 = vadd.f32 0.0, %v436
        %v438 = vpop.f32.mrb[0].mxu0
        %439 = vmatprep.mubr.bf16.mxu0 0
        %440 = vmatmul.mubr.bf16.gmra.mrb[0].mxu0 %v373
        %v441 = vpop.f32.mrb[0].mxu0
        %v442 = vadd.f32 0.0, %v441
        %v443 = vpop.f32.mrb[0].mxu0
        %v444 = vpop.f32.mrb[0].mxu0
        %v445 = vadd.f32 0.0, %v444
        %v446 = vpop.f32.mrb[0].mxu0
        %447 = vdwg.mxu0
        %v452 = vunpack.c.l.b16 %v350
        %v453 = vunpack.c.l.b16 %v351
        %v454 = vunpack.c.l.b16 %v352
        %v455 = vunpack.c.l.b16 %v353
        %v456 = vpack.c.b16 %v453, %v452
        %v457 = vpack.c.b16 %v455, %v454
        %v459 = vsel %vm368, %v456, 0
        %v462 = vsel %vm368, %v457, 0
        %v465 = vsel %vm368, %v318, 0
        %v468 = vsel %vm368, %v319, 0
        %v471 = vsel %vm368, %v320, 0
        %v474 = vsel %vm368, %v321, 0
        %v477 = vsel %vm368, %v322, 0
        %v480 = vsel %vm368, %v323, 0
        %v483 = vsel %vm368, %v324, 0
        %v486 = vsel %vm368, %v325, 0
        %488 = vmatprep.subr.bf16.mxu0 0
        %489 = vmatpush1.bf16.xpose.msra.mxu0 %v465
        %490 = vmatprep.subr.bf16.mxu0 0
        %491 = vmatpush1.bf16.xpose.msra.mxu0 %v468
        %492 = vmatprep.subr.bf16.mxu0 0
        %493 = vmatpush1.bf16.xpose.msra.mxu0 %v471
        %494 = vmatprep.subr.bf16.mxu0 0
        %495 = vmatpush1.bf16.xpose.msra.mxu0 %v474
        %496 = vmatprep.subr.bf16.mxu0 0
        %497 = vmatpush1.bf16.xpose.msra.mxu0 %v477
        %498 = vmatprep.subr.bf16.mxu0 0
        %499 = vmatpush1.bf16.xpose.msra.mxu0 %v480
        %500 = vmatprep.subr.bf16.mxu0 0
        %501 = vmatpush1.bf16.xpose.msra.mxu0 %v483
        %502 = vmatprep.subr.bf16.mxu0 0
        %503 = vmatpush1.bf16.xpose.msra.mxu0 %v486
        %504 = vmatprep.subr.bf16.mxu0 0
        %505 = vmatpush1.bf16.xpose.msra.mxu0 0
        %506 = vmatprep.subr.bf16.mxu0 0
        %507 = vmatpush1.bf16.xpose.msra.mxu0 0
        %508 = vmatprep.subr.bf16.mxu0 0
        %509 = vmatpush1.bf16.xpose.msra.mxu0 0
        %510 = vmatprep.subr.bf16.mxu0 0
        %511 = vmatpush1.bf16.xpose.msra.mxu0 0
        %512 = vmatprep.subr.bf16.mxu0 0
        %513 = vmatpush1.bf16.xpose.msra.mxu0 0
        %514 = vmatprep.subr.bf16.mxu0 0
        %515 = vmatpush1.bf16.xpose.msra.mxu0 0
        %516 = vmatprep.subr.bf16.mxu0 0
        %517 = vmatpush1.bf16.xpose.msra.mxu0 0
        %518 = vmatprep.subr.bf16.mxu0 0
        %519 = vmatpush1.bf16.xpose.msra.mxu0 0
        %520 = vmatprep.mubr.bf16.mxu0 0
        %521 = vmatmul.mubr.bf16.gmra.mrb[0].mxu0 %v459
        %v522 = vpop.f32.mrb[0].mxu0
        %v523 = vadd.f32 %v434, %v522
        %v524 = vpop.f32.mrb[0].mxu0
        %v525 = vpop.f32.mrb[0].mxu0
        %v526 = vadd.f32 %v437, %v525
        %v527 = vpop.f32.mrb[0].mxu0
        %528 = vmatprep.mubr.bf16.mxu0 0
        %529 = vmatmul.mubr.bf16.gmra.mrb[0].mxu0 %v462
        %v530 = vpop.f32.mrb[0].mxu0
        %v531 = vadd.f32 %v442, %v530
        %v532 = vpop.f32.mrb[0].mxu0
        %v533 = vpop.f32.mrb[0].mxu0
        %v534 = vadd.f32 %v445, %v533
        %v535 = vpop.f32.mrb[0].mxu0
        %536 = vdwg.mxu0
        %v537 = vld [vmem:[%s4] sm:$0xff]
        %v538 = vld [vmem:[%s4 + $0x8] sm:$0xff]
        %v539 = vld [vmem:[%s4 + $0x10] sm:$0xff]
        %v540 = vld [vmem:[%s4 + $0x18] sm:$0xff]
        %542 = vset.pattern.permute.xlu0 0
        %543 = vperm.xlu0 %542, %v537
        %v544 = vpop.permute.xlu0 %543
        %547 = vset.pattern.permute.xlu0 0
        %548 = vperm.xlu0 %547, %v538
        %v549 = vpop.permute.xlu0 %548
        %552 = vset.pattern.permute.xlu0 0
        %553 = vperm.xlu0 %552, %v539
        %v554 = vpop.permute.xlu0 %553
        %557 = vset.pattern.permute.xlu0 0
        %558 = vperm.xlu0 %557, %v540
        %v559 = vpop.permute.xlu0 %558
        %v561 = vadd.f32 %v523, %v544
        %v562 = vadd.f32 %v526, %v549
        %v563 = vadd.f32 %v531, %v554
        %v564 = vadd.f32 %v534, %v559
        %v565 = vmul.f32 %v561, 0.2
        %v566 = vmul.f32 %v562, 0.2
        %v567 = vmul.f32 %v563, 0.2
        %v568 = vmul.f32 %v564, 0.2
        %v569 = vmax.f32 %v561, %v565
        %v570 = vmax.f32 %v562, %v566
        %v571 = vmax.f32 %v563, %v567
        %v572 = vmax.f32 %v564, %v568
        %v573 = vld [vmem:[%s5] sm:$0x1]
        %v574 = vpack.c.bf16 %v570, %v569
        %v575 = vpack.c.bf16 %v572, %v571
        %s576 = sld [smem:[#allocation2]]
        %v577 = vstv %s576
        %v579 = vsel %vm368, %v573, 0
        %581 = vmatprep.subr.bf16.mxu0 0
        %582 = vmatpush1.bf16.msra.mxu0 %v574
        %583 = vmatprep.subr.bf16.mxu0 0
        %584 = vmatpush1.bf16.msra.mxu0 %v575
        %585 = vmatprep.subr.bf16.mxu0 0
        %586 = vmatpush1.bf16.msra.mxu0 0
        %587 = vmatprep.subr.bf16.mxu0 0
        %588 = vmatpush1.bf16.msra.mxu0 0
        %589 = vmatprep.subr.bf16.mxu0 0
        %590 = vmatpush1.bf16.msra.mxu0 0
        %591 = vmatprep.subr.bf16.mxu0 0
        %592 = vmatpush1.bf16.msra.mxu0 0
        %593 = vmatprep.subr.bf16.mxu0 0
        %594 = vmatpush1.bf16.msra.mxu0 0
        %595 = vmatprep.subr.bf16.mxu0 0
        %596 = vmatpush1.bf16.msra.mxu0 0
        %597 = vmatprep.subr.bf16.mxu0 0
        %598 = vmatpush1.bf16.msra.mxu0 0
        %599 = vmatprep.subr.bf16.mxu0 0
        %600 = vmatpush1.bf16.msra.mxu0 0
        %601 = vmatprep.subr.bf16.mxu0 0
        %602 = vmatpush1.bf16.msra.mxu0 0
        %603 = vmatprep.subr.bf16.mxu0 0
        %604 = vmatpush1.bf16.msra.mxu0 0
        %605 = vmatprep.subr.bf16.mxu0 0
        %606 = vmatpush1.bf16.msra.mxu0 0
        %607 = vmatprep.subr.bf16.mxu0 0
        %608 = vmatpush1.bf16.msra.mxu0 0
        %609 = vmatprep.subr.bf16.mxu0 0
        %610 = vmatpush1.bf16.msra.mxu0 0
        %611 = vmatprep.subr.bf16.mxu0 0
        %612 = vmatpush1.bf16.msra.mxu0 0
        %613 = vmatprep.mubr.bf16.mxu0 0
        %614 = vmatmul.mubr.bf16.gmra.mrb[0].mxu0 %v579
        %v615 = vpop.f32.mrb[0].mxu0
        %v616 = vadd.f32 %v577, %v615
        %v617 = vpop.f32.mrb[0].mxu0
        %v618 = vpop.f32.mrb[0].mxu0
        %v619 = vpop.f32.mrb[0].mxu0
        %620 = vdwg.mxu0
        %621 = vst [vmem:[%s288] sm:$0x1] %v616
        %s622 = sand.u32 %s187, 1
        %s623 = scalar_lea.sflag [#allocation4], %s622
        %s624 = sand.u32 %s187, 1
        %s625 = scalar_lea.vmem [#allocation3], %s624
        // Predicated region
        $region49: #{tpu_custom_call.1} parent=47 // pred_check
          %p626 = pneg %p197
        $region50: #{tpu_custom_call.1} parent=47 // pred_check_branch
          %628 = sbr.rel (%p626) target = $region52
        $region51: #{tpu_custom_call.1} parent=47 // pred_region
          %s630 = ssub.s32 16, 16
          %631 = vsyncadd %s623, %s630
          %s632 = smul.addr %s22, 16
          %s633 = scalar_lea.hbm %s7, %s632
          %s635 = sshll.u32 %s625, 4
          %s636 = int_to_ptr.vmem [resolvable:$true] %s635
          %638 = dma.vmem_to_hbm [thread:$0]  %s636, 16, %s633, %s623
        $region52: #{tpu_custom_call.1} parent=47 // pred_fallthru
          _
      $region48: #{tpu_custom_call.1} parent=5 // pred_fallthru
        _
      %p639 = scmp.le.s32.totalorder 2, %s17
      // Predicated region
      $region53: #{tpu_custom_call.1} parent=5 // pred_check
        %p640 = pneg %p639
      $region54: #{tpu_custom_call.1} parent=5 // pred_check_branch
        %642 = sbr.rel (%p640) target = $region56
      $region55: #{tpu_custom_call.1} parent=5 // pred_region
        %s643 = ssub.s32 %s17, 2
        // Predicated region
        $region57: #{tpu_custom_call.1} parent=55 // pred_check
          %p644 = pneg %p203
        $region58: #{tpu_custom_call.1} parent=55 // pred_check_branch
          %646 = sbr.rel (%p644) target = $region60
        $region59: #{tpu_custom_call.1} parent=55 // pred_region
          %s647 = sand.u32 %s188, 1
          %s648 = scalar_lea.sflag [#allocation4], %s647
          %s649 = sand.u32 %s188, 1
          %s650 = scalar_lea.vmem [#allocation3], %s649
          %651 = dma.done %s648, 16
        $region60: #{tpu_custom_call.1} parent=55 // pred_fallthru
          _
      $region56: #{tpu_custom_call.1} parent=5 // pred_fallthru
        _
    $region6: #{tpu_custom_call.1} parent=1 // loop_footer
      %s21 = sadd.s32 1, %s17
    $region7: #{tpu_custom_call.1} parent=1 // loop_footer_branch
      %16 = sbr.rel target = $region3
    $region8: #{tpu_custom_call.1} parent=1 // loop_exit
      _
    %652 = vsyncpa [#allocation4], 1
    %s653 = scalar_lea.sflag [#allocation4], 1
    %654 = vsyncpa %s653, 1

</llo_original>
